<compile_context>
chip_gen: v6e
topology: v6e:2x2x1
jax: 0.10.0
libtpu: 0.0.40
codegen_flags: <defaults>
</compile_context>

<pallas_src>
import functools

import jax
import jax.numpy as jnp
from jax.experimental import pallas as pl
from jax.experimental.pallas import tpu as pltpu

LANES = 128
SUBLANES = 8
_TARGET_BLOCK_BYTES = 2 * 1024 * 1024     # ~2 MiB per input block per grid step
_VMEM_LIMIT_BYTES = 32 * 1024 * 1024      # fits v5e/v6e/v7x scoped VMEM


def _loss_expr(p, t, beta):
    """Elementwise smooth-L1 in f32. `beta` is a baked-in Python float."""
    n = jnp.abs(p.astype(jnp.float32) - t.astype(jnp.float32))
    if beta == 0.0:                       # PyTorch's pure-L1 degenerate mode
        return n
    return jnp.where(n < beta, (0.5 / beta) * n * n, n - 0.5 * beta)


def _sum_kernel(p_ref, t_ref, out_ref, *, beta, tile_rows, inner_steps,
                num_blocks, rem_rows, guard_overflow):
    """Accumulate per-(8,128)-lane partial sums; out block resident over inner axis."""
    o = pl.program_id(0)
    i = pl.program_id(1)
    block = o * inner_steps + i

    @pl.when(i == 0)
    def _init():
        out_ref[...] = jnp.zeros_like(out_ref)

    loss = _loss_expr(p_ref[...], t_ref[...], beta)

    def fold(x):  # (tile_rows, 128) -> (8, 128): pure VPU vreg adds
        return x.reshape(tile_rows // SUBLANES, SUBLANES, LANES).sum(axis=0)

    if rem_rows != tile_rows:
        # A partial last block exists: mask it, all other blocks stay unmasked.
        is_tail = block == num_blocks - 1
        full = jnp.logical_not(is_tail)
        if guard_overflow:
            full = jnp.logical_and(full, block < num_blocks)

        @pl.when(full)
        def _full():
            out_ref[...] += fold(loss)

        @pl.when(is_tail)
        def _tail():
            row = jax.lax.broadcasted_iota(jnp.int32, (tile_rows, LANES), 0)
            out_ref[...] += fold(jnp.where(row < rem_rows, loss, 0.0))
    else:
        if guard_overflow:
            @pl.when(block < num_blocks)
            def _acc():
                out_ref[...] += fold(loss)
        else:
            out_ref[...] += fold(loss)


def _map_kernel(p_ref, t_ref, o_ref, *, beta):
    o_ref[...] = _loss_expr(p_ref[...], t_ref[...], beta).astype(o_ref.dtype)


def _num_tensorcores():
    """2 TensorCores on v7x (and megacore v4/v5p); 1 on v5e/v6e."""
    try:
        kind = jax.devices()[0].device_kind.lower()
    except Exception:
        return 1
    return 2 if any(tag in kind for tag in ("v7", "v4", "v5p")) else 1


def _default_tile_rows(itemsize):
    rows = _TARGET_BLOCK_BYTES // (LANES * int(itemsize))
    return max(SUBLANES, (rows // SUBLANES) * SUBLANES)


def _pallas_sum(p2, t2, beta, tile_rows, force_outer):
    rows_all = p2.shape[0]
    tile_rows = min(tile_rows, (rows_all // SUBLANES) * SUBLANES)
    tile_rows = max(SUBLANES, (tile_rows // SUBLANES) * SUBLANES)
    num_blocks = pl.cdiv(rows_all, tile_rows)
    rem_rows = rows_all - (num_blocks - 1) * tile_rows

    cores = force_outer if force_outer is not None else _num_tensorcores()
    outer = 2 if (cores >= 2 and num_blocks >= 2) else 1
    inner = pl.cdiv(num_blocks, outer)
    guard_overflow = outer * inner > num_blocks

    def in_map(o, i):
        b = o * inner + i
        if guard_overflow:
            b = jnp.minimum(b, num_blocks - 1)   # keep the DMA window in-bounds
        return (b, 0)

    in_spec = pl.BlockSpec((tile_rows, LANES), in_map)
    kernel = functools.partial(
        _sum_kernel, beta=beta, tile_rows=tile_rows, inner_steps=inner,
        num_blocks=num_blocks, rem_rows=rem_rows, guard_overflow=guard_overflow)

    partials = pl.pallas_call(
        kernel,
        out_shape=jax.ShapeDtypeStruct((outer * SUBLANES, LANES), jnp.float32),
        grid_spec=pltpu.PrefetchScalarGridSpec(
            num_scalar_prefetch=0,
            grid=(outer, inner),
            in_specs=[in_spec, in_spec],
            out_specs=pl.BlockSpec((SUBLANES, LANES), lambda o, i: (o, 0)),
        ),
        compiler_params=pltpu.CompilerParams(
            dimension_semantics=("parallel", "arbitrary"),
            vmem_limit_bytes=_VMEM_LIMIT_BYTES),
    )(p2, t2)
    return jnp.sum(partials, dtype=jnp.float32)


def _pallas_map(p2, t2, out_dtype, beta, tile_rows):
    rows_all = p2.shape[0]
    if rows_all <= tile_rows:
        tile_rows = rows_all                    # single full-extent block
    else:
        tile_rows = max(SUBLANES, (tile_rows // SUBLANES) * SUBLANES)
    grid = (pl.cdiv(rows_all, tile_rows),)
    spec = pl.BlockSpec((tile_rows, LANES), lambda i: (i, 0))
    return pl.pallas_call(
        functools.partial(_map_kernel, beta=beta),
        out_shape=jax.ShapeDtypeStruct((rows_all, LANES), out_dtype),
        grid_spec=pltpu.PrefetchScalarGridSpec(
            num_scalar_prefetch=0, grid=grid,
            in_specs=[spec, spec], out_specs=spec),
        compiler_params=pltpu.CompilerParams(
            dimension_semantics=("parallel",),
            vmem_limit_bytes=_VMEM_LIMIT_BYTES),
    )(p2, t2)


def smooth_l1_loss(pred, target, beta=1.0 / 9.0, reduction="mean",
                   tile_rows=None, _force_outer=None):
    """Matches the PyTorch SmoothL1Loss module's forward semantics."""
    assert pred.shape == target.shape, (pred.shape, target.shape)
    beta = float(beta)
    total = pred.size
    p_flat = pred.reshape(-1)                   # free bitcast
    t_flat = target.reshape(-1)
    if tile_rows is None:
        tile_rows = _default_tile_rows(jnp.dtype(pred.dtype).itemsize)

    aligned = (total // LANES) * LANES          # lane-aligned prefix
    rows_all = aligned // LANES

    if reduction not in ("mean", "sum"):
        # PyTorch module falls through: return the elementwise loss map.
        if rows_all < SUBLANES:                 # tiny input: kernel not worth it
            return _loss_expr(pred, target, beta).astype(pred.dtype)
        if aligned == total:                    # free reshape, zero wrapper copies
            p2 = p_flat.reshape(rows_all, LANES)
            t2 = t_flat.reshape(rows_all, LANES)
            return _pallas_map(p2, t2, pred.dtype, beta, tile_rows).reshape(pred.shape)
        # Ragged: kernel on the aligned prefix, <128-element tail with plain jnp.
        p2 = p_flat[:aligned].reshape(rows_all, LANES)
        t2 = t_flat[:aligned].reshape(rows_all, LANES)
        out = _pallas_map(p2, t2, pred.dtype, beta, tile_rows).reshape(-1)
        tail = _loss_expr(p_flat[aligned:], t_flat[aligned:], beta).astype(pred.dtype)
        return jnp.concatenate([out, tail]).reshape(pred.shape)

    # --- reduction in ('mean', 'sum') ---
    if rows_all < SUBLANES:                     # tiny input: plain jnp
        loss_sum = jnp.sum(_loss_expr(p_flat, t_flat, beta))
    elif aligned == total:                      # native dtype, free reshape
        p2 = p_flat.reshape(rows_all, LANES)
        t2 = t_flat.reshape(rows_all, LANES)
        loss_sum = _pallas_sum(p2, t2, beta, tile_rows, _force_outer)
    else:                                       # ragged: prefix kernel + jnp tail
        p2 = p_flat[:aligned].reshape(rows_all, LANES)
        t2 = t_flat[:aligned].reshape(rows_all, LANES)
        loss_sum = _pallas_sum(p2, t2, beta, tile_rows, _force_outer)
        loss_sum = loss_sum + jnp.sum(
            _loss_expr(p_flat[aligned:], t_flat[aligned:], beta))

    if reduction == "mean":
        loss_sum = loss_sum / jnp.float32(total)
    return loss_sum.astype(pred.dtype)


def _reference(pred, target, beta=1.0 / 9.0, reduction="mean"):
    n = jnp.abs(pred.astype(jnp.float32) - target.astype(jnp.float32))
    loss = jnp.where(n < beta, 0.5 * n * n / beta, n - 0.5 * beta)
    if reduction == "mean":
        return jnp.mean(loss)
    if reduction == "sum":
        return jnp.sum(loss)
    return loss


if __name__ == "__main__":
    key = jax.random.PRNGKey(0)
    k1, k2, k3, k4 = jax.random.split(key, 4)

    # Primary shape: NCHW conv-head regression output.
    pred = jax.random.normal(k1, (2, 4, 16, 16), dtype=jnp.float32)
    target = jax.random.normal(k2, (2, 4, 16, 16), dtype=jnp.float32)

    out = jax.block_until_ready(
        jax.jit(lambda p, t: smooth_l1_loss(p, t, reduction="mean"))(pred, target))
    ref = _reference(pred, target, reduction="mean")
    assert jnp.allclose(out, ref, rtol=1e-5, atol=1e-6), (out, ref)

    out_sum = jax.block_until_ready(
        jax.jit(lambda p, t: smooth_l1_loss(p, t, reduction="sum"))(pred, target))
    ref_sum = _reference(pred, target, reduction="sum")
    assert jnp.allclose(out_sum, ref_sum, rtol=1e-5, atol=1e-5), (out_sum, ref_sum)

    out_map = jax.block_until_ready(
        jax.jit(lambda p, t: smooth_l1_loss(p, t, reduction="none"))(pred, target))
    assert out_map.shape == pred.shape
    assert jnp.allclose(out_map, _reference(pred, target, reduction="none"),
                        rtol=1e-5, atol=1e-6)

    # Ragged size: aligned-prefix kernel + jnp tail, partial (masked) last block.
    p_odd = jax.random.normal(k3, (3, 5, 37, 41), dtype=jnp.float32)
    t_odd = jax.random.normal(k4, (3, 5, 37, 41), dtype=jnp.float32)
    ref_odd = _reference(p_odd, t_odd)
    out_odd = jax.block_until_ready(
        jax.jit(lambda p, t: smooth_l1_loss(p, t))(p_odd, t_odd))
    assert jnp.allclose(out_odd, ref_odd, rtol=1e-5, atol=1e-6), (out_odd, ref_odd)

    # Multi-block reduction with a partial tail block (small tiles).
    out_mb = jax.block_until_ready(
        jax.jit(lambda p, t: smooth_l1_loss(p, t, tile_rows=16))(p_odd, t_odd))
    assert jnp.allclose(out_mb, ref_odd, rtol=1e-5, atol=1e-6), (out_mb, ref_odd)

    # Forced 2-way outer split with an odd block count (v7x path: clamp + guard).
    out_split = jax.block_until_ready(
        jax.jit(lambda p, t: smooth_l1_loss(p, t, tile_rows=40,
                                            _force_outer=2))(p_odd, t_odd))
    assert jnp.allclose(out_split, ref_odd, rtol=1e-5, atol=1e-6), (out_split, ref_odd)

    # Native bf16 inputs (no wrapper-side f32 copies; cast happens in-kernel).
    p_bf = pred.astype(jnp.bfloat16)
    t_bf = target.astype(jnp.bfloat16)
    out_bf = jax.block_until_ready(
        jax.jit(lambda p, t: smooth_l1_loss(p, t))(p_bf, t_bf))
    ref_bf = _reference(p_bf, t_bf)
    assert jnp.allclose(out_bf.astype(jnp.float32), ref_bf, rtol=2e-2, atol=2e-2)

    print("KERNEL_OK")
</pallas_src>

<mosaic_0001>
module attributes {stable_mosaic.version = 11 : i64} {
  func.func @_sum_kernel(%arg0: i32, %arg1: i32, %arg2: memref<16x128xf32, #tpu.memory_space<vmem>>, %arg3: memref<16x128xf32, #tpu.memory_space<vmem>>, %arg4: memref<8x128xf32, #tpu.memory_space<vmem>>) attributes {dimension_semantics = [#tpu.dimension_semantics<parallel>, #tpu.dimension_semantics<arbitrary>], iteration_bounds = array<i64: 1, 1>, scalar_prefetch = 0 : i64, scratch_operands = 0 : i64, tpu.core_type = #tpu.core_type<tc>, window_params = [{transform_indices = @transform_0, window_bounds = array<i64: 16, 128>}, {transform_indices = @transform_1, window_bounds = array<i64: 16, 128>}, {transform_indices = @transform_2, window_bounds = array<i64: 8, 128>}]} {
    %c0_i32 = arith.constant 0 : i32
    %0 = arith.cmpi eq, %arg1, %c0_i32 : i32
    %1 = arith.extui %0 : i1 to i32
    %c0_i32_0 = arith.constant 0 : i32
    %2 = arith.cmpi ne, %1, %c0_i32_0 : i32
    scf.if %2 {
      %cst_11 = arith.constant 0.000000e+00 : f32
      %20 = vector.broadcast %cst_11 : f32 to vector<8x128xf32>
      %c0_12 = arith.constant 0 : index
      %c0_13 = arith.constant 0 : index
      %21 = vector.load %arg4[%c0_12, %c0_13] : memref<8x128xf32, #tpu.memory_space<vmem>>, vector<8x128xf32>
      tpu.vector_store %arg4[%c0_12, %c0_13], %20 {strides = array<i32>} : memref<8x128xf32, #tpu.memory_space<vmem>>, vector<8x128xf32>,
    } else {
    }
    %c0 = arith.constant 0 : index
    %c0_1 = arith.constant 0 : index
    %3 = vector.load %arg2[%c0, %c0_1] : memref<16x128xf32, #tpu.memory_space<vmem>>, vector<16x128xf32>
    %c0_2 = arith.constant 0 : index
    %c0_3 = arith.constant 0 : index
    %4 = vector.load %arg3[%c0_2, %c0_3] : memref<16x128xf32, #tpu.memory_space<vmem>>, vector<16x128xf32>
    %5 = arith.subf %3, %4 : vector<16x128xf32>
    %6 = math.absf %5 : vector<16x128xf32>
    %cst = arith.constant 0.111111112 : f32
    %7 = vector.broadcast %cst : f32 to vector<16x128xf32>
    %8 = arith.cmpf olt, %6, %7 : vector<16x128xf32>
    %cst_4 = arith.constant 4.500000e+00 : f32
    %9 = vector.broadcast %cst_4 : f32 to vector<16x128xf32>
    %10 = arith.mulf %9, %6 : vector<16x128xf32>
    %11 = arith.mulf %10, %6 : vector<16x128xf32>
    %cst_5 = arith.constant 0.055555556 : f32
    %12 = vector.broadcast %cst_5 : f32 to vector<16x128xf32>
    %13 = arith.subf %6, %12 : vector<16x128xf32>
    %14 = arith.select %8, %11, %13 : vector<16x128xi1>, vector<16x128xf32>
    %c0_6 = arith.constant 0 : index
    %c0_7 = arith.constant 0 : index
    %15 = vector.load %arg4[%c0_6, %c0_7] : memref<8x128xf32, #tpu.memory_space<vmem>>, vector<8x128xf32>
    %16 = vector.shape_cast %14 : vector<16x128xf32> to vector<2x8x128xf32>
    %cst_8 = arith.constant dense<0.000000e+00> : vector<8x128xf32>
    %17 = vector.multi_reduction <add>, %16, %cst_8 [0] : vector<2x8x128xf32> to vector<8x128xf32>
    %18 = arith.addf %15, %17 : vector<8x128xf32>
    %c0_9 = arith.constant 0 : index
    %c0_10 = arith.constant 0 : index
    %19 = vector.load %arg4[%c0_9, %c0_10] : memref<8x128xf32, #tpu.memory_space<vmem>>, vector<8x128xf32>
    tpu.vector_store %arg4[%c0_9, %c0_10], %18 {strides = array<i32>} : memref<8x128xf32, #tpu.memory_space<vmem>>, vector<8x128xf32>,
    return
  }
  func.func @transform_0(%arg0: i32, %arg1: i32) -> (i32, i32) {
    %c1_i32 = arith.constant 1 : i32
    %0 = arith.muli %arg0, %c1_i32 : i32
    %1 = arith.addi %0, %arg1 : i32
    %c0_i32 = arith.constant 0 : i32
    %c0_i32_0 = arith.constant 0 : i32
    return %1, %c0_i32 : i32, i32
  }
  func.func @transform_1(%arg0: i32, %arg1: i32) -> (i32, i32) {
    %c1_i32 = arith.constant 1 : i32
    %0 = arith.muli %arg0, %c1_i32 : i32
    %1 = arith.addi %0, %arg1 : i32
    %c0_i32 = arith.constant 0 : i32
    %c0_i32_0 = arith.constant 0 : i32
    return %1, %c0_i32 : i32, i32
  }
  func.func @transform_2(%arg0: i32, %arg1: i32) -> (i32, i32) {
    %c0_i32 = arith.constant 0 : i32
    %c0_i32_0 = arith.constant 0 : i32
    return %arg0, %c0_i32 : i32, i32
  }
}

</mosaic_0001>

<llo_original>
// kernel: _lambda_.1
$region0: #{_lambda_.1}
  #allocation0 [shape = 'u32[]', space=smem, size = 0x4, offset = 0x4, fixed_abs, tag = 'smem constant byte address 0x4 - core index']
  #allocation1 [shape = 'u32[144,128]{1,0:T(1,128)}', space=vmem, size = 0x12000, scoped, tag = 'internal scratch']
  %s0 = inlined_call_operand.vmem [shape: f32[16,128], index: 0, kind: input, shape index: {}]
  %s1 = inlined_call_operand.vmem [shape: f32[16,128], index: 1, kind: input, shape index: {}]
  %s2 = inlined_call_operand.vmem [shape: f32[8,128], index: 2, kind: output, shape index: {}]
  %s3 = sld [smem:[#allocation0]]
  $region22: #{_lambda_.1} parent=0
    _
  %s5 = ssub.s32 1, %s3
  %s6 = scalar_select 0, %s5, %s3
  // Predicated region
  $region2: #{_lambda_.1} parent=0 // pred_check
    _
  $region3: #{_lambda_.1} parent=0 // pred_check_branch
    %8 = sbr.rel (0) target = $region5
  $region4: #{_lambda_.1} parent=0 // pred_region
    %s9 = sadd.s32 0, 0
    %s10 = smul.u32 2, %s9
    %p11 = scmp.lt.s32.totalorder %s10, 1
    %s12 = scalar_select %p11, %s10, 1
    %s13 = smul.addr %s12, 8
    %s14 = scalar_lea.vmem %s0, %s13
    %s15 = sadd.s32 0, 0
    %s16 = smul.u32 2, %s15
  $region5: #{_lambda_.1} parent=0 // pred_fallthru
    _
  // Predicated region
  $region6: #{_lambda_.1} parent=0 // pred_check
    _
  $region7: #{_lambda_.1} parent=0 // pred_check_branch
    %18 = sbr.rel (0) target = $region9
  $region8: #{_lambda_.1} parent=0 // pred_region
    %s19 = sadd.s32 0, 0
    %s20 = smul.u32 2, %s19
    %p21 = scmp.lt.s32.totalorder %s20, 1
    %s22 = scalar_select %p21, %s20, 1
    %s23 = smul.addr %s22, 8
    %s24 = scalar_lea.vmem %s1, %s23
    %s25 = sadd.s32 0, 0
    %s26 = smul.u32 2, %s25
  $region9: #{_lambda_.1} parent=0 // pred_fallthru
    _
  %s27 = sadd.s32 0, 0
  %s28 = smul.u32 2, %s27
  %p29 = scmp.lt.s32.totalorder %s28, 1
  %s30 = scalar_select %p29, %s28, 1
  %s31 = smul.addr %s30, 8
  %s32 = scalar_lea.vmem %s0, %s31
  %s33 = sadd.s32 0, 0
  %s34 = smul.u32 2, %s33
  %p35 = scmp.lt.s32.totalorder %s34, 1
  %s36 = scalar_select %p35, %s34, 1
  %s37 = smul.addr %s36, 8
  %s38 = scalar_lea.vmem %s1, %s37
  %s39 = sadd.s32 0, 0
  %s40 = smul.u32 2, %s39
  %p41 = scmp.lt.s32.totalorder %s40, 1
  %s42 = scalar_select %p41, %s40, 1
  %s43 = smul.addr %s42, 8
  %s44 = scalar_lea.vmem %s0, %s43
  %s45 = sadd.s32 0, 0
  %s46 = smul.u32 2, %s45
  %s47 = sadd.s32 0, 0
  %s48 = smul.u32 2, %s47
  %p49 = scmp.lt.s32.totalorder %s48, 1
  %s50 = scalar_select %p49, %s48, 1
  %s51 = smul.addr %s50, 8
  %s52 = scalar_lea.vmem %s1, %s51
  %s53 = sadd.s32 0, 0
  %s54 = smul.u32 2, %s53
  %p55 = scmp.eq.s32.totalorder 0, 0
  // Predicated region
  $region10: #{_lambda_.1} parent=0 // pred_check
    %p56 = pneg %p55
  $region11: #{_lambda_.1} parent=0 // pred_check_branch
    %58 = sbr.rel (%p56) target = $region13
  $region12: #{_lambda_.1} parent=0 // pred_region
    %59 = vst [vmem:[%s2] sm:$0xff] 0.0
  $region13: #{_lambda_.1} parent=0 // pred_fallthru
    _
  %v60 = vld [vmem:[%s44] sm:$0xff]
  %v61 = vld [vmem:[%s44 + $0x8] sm:$0xff]
  %v62 = vld [vmem:[%s52] sm:$0xff]
  %v63 = vld [vmem:[%s52 + $0x8] sm:$0xff]
  %v64 = vsub.f32 %v60, %v62
  %v65 = vsub.f32 %v61, %v63
  %v66 = vand.u32 2147483647, %v64
  %v67 = vand.u32 2147483647, %v65
  %vm68 = vcmp.lt.f32.partialorder %v66, 0.11111111
  %vm69 = vcmp.lt.f32.partialorder %v67, 0.11111111
  %v70 = vmul.f32 %v66, 4.5
  %v71 = vmul.f32 %v67, 4.5
  %v72 = vmul.f32 %v70, %v66
  %v73 = vmul.f32 %v71, %v67
  %v74 = vsub.f32 %v66, 0.055555556
  %v75 = vsub.f32 %v67, 0.055555556
  %v76 = vsel %vm68, %v72, %v74
  %v77 = vsel %vm69, %v73, %v75
  %v78 = vld [vmem:[%s2] sm:$0xff]
  %v79 = vadd.f32 %v76, %v77
  %v80 = vadd.f32 %v78, %v79
  %81 = vst [vmem:[%s2] sm:$0xff] %v80
  // Predicated region
  $region14: #{_lambda_.1} parent=0 // pred_check
    _
  $region15: #{_lambda_.1} parent=0 // pred_check_branch
    %83 = sbr.rel (0) target = $region17
  $region16: #{_lambda_.1} parent=0 // pred_region
    _
  $region17: #{_lambda_.1} parent=0 // pred_fallthru
    _
  // Predicated region
  $region18: #{_lambda_.1} parent=0 // pred_check
    _
  $region19: #{_lambda_.1} parent=0 // pred_check_branch
    %85 = sbr.rel (0) target = $region21
  $region20: #{_lambda_.1} parent=0 // pred_region
    _
  $region21: #{_lambda_.1} parent=0 // pred_fallthru
    _

</llo_original>
